<compile_context>
chip_gen: v5e
topology: v5e:2x2
jax: 0.10.0
libtpu: 0.0.40
codegen_flags: <defaults>
</compile_context>

<pallas_src>
import jax
import jax.numpy as jnp
from jax.experimental import pallas as pl
from jax.experimental.pallas import tpu as pltpu


# ----------------------------------------------------------------------------
# Kernel
# ----------------------------------------------------------------------------
def _clip_loss_kernel(inv_temp_ref, img_ref, txt_ref, txt_diag_ref,
                      pcol_ref, prow_ref, img_s, row_m, row_s):
    j = pl.program_id(1)
    nj = pl.num_programs(1)
    inv_temp = inv_temp_ref[0, 0]

    # --- new row tile: fold the temperature into the (resident) image block
    # once -- f32 multiply, then a single cast to the MXU dtype -- and reset
    # the online row-LSE state.  Hoists nj-1 scale/cast passes per row tile.
    @pl.when(j == 0)
    def _start_row_tile():
        img_s[...] = (img_ref[...].astype(jnp.float32)
                      * inv_temp).astype(img_s.dtype)
        row_m[...] = jnp.full(row_m.shape, -jnp.inf, dtype=row_m.dtype)
        row_s[...] = jnp.zeros(row_s.shape, dtype=row_s.dtype)

    img = img_s[...]                                   # (tm, D) scaled, MXU dtype
    txt = txt_ref[...]                                 # (tn, D) MXU dtype

    # MXU: (tm, tn) logits tile, f32 accumulation.  Contracting dim 1 of both
    # operands avoids any wrapper-side transpose of the text matrix.
    logits = jax.lax.dot_general(
        img, txt, dimension_numbers=(((1,), (1,)), ((), ())),
        preferred_element_type=jnp.float32)            # (tm, tn)

    # ---- image -> text: online row log-sum-exp across column tiles ---------
    m_prev = row_m[...]                                # (tm, 1)
    m_new = jnp.maximum(m_prev, jnp.max(logits, axis=1, keepdims=True))
    row_s[...] = row_s[...] * jnp.exp(m_prev - m_new) + jnp.sum(
        jnp.exp(logits - m_new), axis=1, keepdims=True)
    row_m[...] = m_new

    # ---- text -> image: per-tile partial column LSE (no carried state) ------
    # Partials of different row tiles are merged by a tiny logsumexp in JAX,
    # which removes the serialized epilogue and every cross-row-tile carry
    # (so the row axis can be "parallel" -> v7x megacore).
    cm = jnp.max(logits, axis=0, keepdims=True)        # (1, tn)
    cs = jnp.sum(jnp.exp(logits - cm), axis=0, keepdims=True)
    pcol_ref[...] = (cm + jnp.log(cs)).reshape(pcol_ref.shape)

    # ---- finalize this row tile after its last column tile -------------------
    @pl.when(j == nj - 1)
    def _finish_row_tile():
        # Diagonal logits in full f32, independent of the MXU dtype:
        # <img_r, txt_r> * (1/T), accumulated over D.  tm*D work, no BxB masks.
        diag = jnp.sum(img_ref[...].astype(jnp.float32) *
                       txt_diag_ref[...].astype(jnp.float32),
                       axis=1, keepdims=True) * inv_temp          # (tm, 1)
        row_lse = row_m[...] + jnp.log(row_s[...])                # (tm, 1)
        # sum_r row_lse_r - 2 * sum_r diag_r  (diagonal is shared by both CEs)
        prow_ref[...] = jnp.sum(row_lse - 2.0 * diag).reshape(prow_ref.shape)


# ----------------------------------------------------------------------------
# Tile / VMEM budgeting helpers
# ----------------------------------------------------------------------------
def _vmem_capacity_bytes():
    try:
        return int(pltpu.get_tpu_info().vmem_capacity_bytes)
    except Exception:
        return 64 * 1024 * 1024   # conservative: v7x physical VMEM per core


def _vmem_estimate(tm, tn, d, in_bytes, mm_bytes, txt_bufs=3):
    """Rough per-kernel VMEM footprint: buffered inputs + scratch + f32 temps."""
    img = 2 * tm * d * in_bytes          # image rows (double-buffered)
    diag = 2 * tm * d * in_bytes         # text rows for the diagonal
    txt = txt_bufs * tn * d * mm_bytes   # streamed text column tiles
    scratch = tm * d * mm_bytes + 2 * tm * 4
    temps = 4 * tm * tn * 4              # logits / exp temporaries (+ slack)
    return img + diag + txt + scratch + temps


def _choose_tiles(batch, d, in_bytes, mm_bytes, budget_bytes):
    """tn moderate & lane-aligned; tm as large as the VMEM budget allows
    (text is re-streamed once per row tile, so HBM traffic ~ B/tm)."""
    if batch % 256 == 0:
        tn = 256
    elif batch % 128 == 0:
        tn = 128
    else:
        tn = batch   # full-dim block (exempt from the (8,128) alignment rule)
    cands = [t for t in (4096, 2048, 1024, 512, 256, 128, 64, 32, 16, 8)
             if t <= batch and batch % t == 0] or [batch]
    for tm in cands:
        if _vmem_estimate(tm, tn, d, in_bytes, mm_bytes) <= budget_bytes:
            return tm, tn
    return cands[-1], tn


def _txt_block_spec(tn, d, nj):
    index_map = lambda i, j: (j, 0)
    # Multi-buffer the only operand whose block index changes every grid step;
    # only worth the extra VMEM when the inner loop has >= 3 steps.
    if nj >= 3 and hasattr(pl, "Buffered"):
        try:
            return pl.BlockSpec((tn, d), index_map, pipeline_mode=pl.Buffered(3))
        except TypeError:   # older BlockSpec signature without pipeline_mode
            pass
    return pl.BlockSpec((tn, d), index_map)


def _logsumexp(x, axis):
    m = jnp.max(x, axis=axis, keepdims=True)
    return jnp.squeeze(m, axis=axis) + jnp.log(jnp.sum(jnp.exp(x - m), axis=axis))


# ----------------------------------------------------------------------------
# Wrapper
# ----------------------------------------------------------------------------
def contrastive_loss_with_temperature(image_embeddings, text_embeddings,
                                      temperature=0.07, *, block_m=None,
                                      block_n=None, matmul_dtype=None):
    """CLIP contrastive loss (forward only).  Pass matmul_dtype=jnp.float32
    for exact-f32 logits; default uses bf16 MXU operands with f32 accumulate."""
    assert image_embeddings.shape[0] == text_embeddings.shape[0], (
        "Batch sizes of image and text embeddings should be the same")
    batch, d = image_embeddings.shape
    in_dtype = image_embeddings.dtype

    if matmul_dtype is None:
        matmul_dtype = (in_dtype if jnp.dtype(in_dtype).itemsize < 4
                        else jnp.bfloat16)
    mm_dtype = jnp.dtype(matmul_dtype)
    in_bytes = jnp.dtype(in_dtype).itemsize
    mm_bytes = mm_dtype.itemsize

    # Per-generation VMEM budget: ~48 MiB scoped limit on v7x (64 MiB phys),
    # ~96 MiB on v5e/v6e (128 MiB phys); tiles sized to ~80% of the limit.
    cap = _vmem_capacity_bytes()
    vmem_limit = min(int(0.75 * cap), 100 * 1024 * 1024)
    budget = int(0.8 * vmem_limit)

    tm_auto, tn_auto = _choose_tiles(batch, d, in_bytes, mm_bytes, budget)
    tm = block_m if block_m is not None else tm_auto
    tn = block_n if block_n is not None else tn_auto
    assert batch % tm == 0 and batch % tn == 0, (batch, tm, tn)
    ni, nj = batch // tm, batch // tn

    # Runtime (1, 1) scalar 1/T in SMEM (supports a traced / learnable scale).
    inv_temp = (1.0 / jnp.asarray(temperature, jnp.float32)).reshape(1, 1)

    # Column-streamed text cast to the MXU dtype outside the kernel (halves the
    # dominant re-streamed HBM traffic for f32 inputs).  The diagonal stream
    # keeps the original dtype so the diag logits stay exactly f32-accumulated.
    txt_mm = (text_embeddings if text_embeddings.dtype == mm_dtype
              else text_embeddings.astype(mm_dtype))

    pcol, prow = pl.pallas_call(
        _clip_loss_kernel,
        out_shape=(
            jax.ShapeDtypeStruct((ni, 1, batch), jnp.float32),  # partial col LSE
            jax.ShapeDtypeStruct((ni, 1, 1), jnp.float32),      # per-row-tile sum
        ),
        grid=(ni, nj),
        in_specs=[
            pl.BlockSpec(memory_space=pltpu.MemorySpace.SMEM),  # 1/temperature
            pl.BlockSpec((tm, d), lambda i, j: (i, 0)),         # image rows
            _txt_block_spec(tn, d, nj),                         # text cols (stream)
            pl.BlockSpec((tm, d), lambda i, j: (i, 0)),         # text rows (diag)
        ],
        out_specs=(
            pl.BlockSpec((1, 1, tn), lambda i, j: (i, 0, j)),
            pl.BlockSpec((1, 1, 1), lambda i, j: (i, 0, 0)),
        ),
        scratch_shapes=[
            pltpu.VMEM((tm, d), mm_dtype),     # temperature-folded image tile
            pltpu.VMEM((tm, 1), jnp.float32),  # running row max
            pltpu.VMEM((tm, 1), jnp.float32),  # running row sum-exp
        ],
        # Row tiles carry no cross-step state -> "parallel" (v7x megacore);
        # the row-LSE carry across column tiles keeps j "arbitrary".
        compiler_params=pltpu.CompilerParams(
            dimension_semantics=("parallel", "arbitrary"),
            vmem_limit_bytes=int(vmem_limit)),
    )(inv_temp, image_embeddings, txt_mm, text_embeddings)

    # Tiny cross-row-tile merge of the text->image partial LSEs (O(ni * B)).
    col_lse = _logsumexp(pcol[:, 0, :], axis=0)                  # (B,)
    return (jnp.sum(prow) + jnp.sum(col_lse)) * (0.5 / batch)


# ----------------------------------------------------------------------------
# Reference & self-test
# ----------------------------------------------------------------------------
def _reference_loss(image_embeddings, text_embeddings, temperature=0.07):
    logits = (image_embeddings @ text_embeddings.T) / temperature
    n = logits.shape[0]
    labels = jnp.arange(n)

    def ce(lg):
        return jnp.mean(_logsumexp(lg, axis=1) - lg[labels, labels])

    return (ce(logits) + ce(logits.T)) / 2.0


if __name__ == "__main__":
    key = jax.random.PRNGKey(0)
    k1, k2, k3, k4, k5, k6 = jax.random.split(key, 6)

    # 1) Small single-tile, full-precision (f32 MXU) path -- tight check.
    B, D = 8, 32
    img = jax.random.normal(k1, (B, D), dtype=jnp.float32)
    txt = jax.random.normal(k2, (B, D), dtype=jnp.float32)
    loss = contrastive_loss_with_temperature(img, txt, temperature=0.07,
                                             matmul_dtype=jnp.float32)
    loss = jax.block_until_ready(loss)
    ref = _reference_loss(img, txt, 0.07)
    assert jnp.allclose(loss, ref, rtol=1e-4, atol=1e-3), (loss, ref)

    # 2) Tiled (2x2 grid) path with bf16 embeddings from the caller (bf16 MXU,
    #    halved HBM traffic), CLIP-style normalized embeddings.
    B2, D2 = 256, 64
    img2 = jax.random.normal(k3, (B2, D2), dtype=jnp.float32)
    txt2 = jax.random.normal(k4, (B2, D2), dtype=jnp.float32)
    img2 = img2 / jnp.linalg.norm(img2, axis=-1, keepdims=True)
    txt2 = txt2 / jnp.linalg.norm(txt2, axis=-1, keepdims=True)
    img2_bf = img2.astype(jnp.bfloat16)
    txt2_bf = txt2.astype(jnp.bfloat16)
    loss2 = contrastive_loss_with_temperature(img2_bf, txt2_bf, temperature=0.07,
                                              block_m=128, block_n=128)
    loss2 = jax.block_until_ready(loss2)
    ref2 = _reference_loss(img2_bf.astype(jnp.float32),
                           txt2_bf.astype(jnp.float32), 0.07)
    assert jnp.allclose(loss2, ref2, rtol=2e-2, atol=2e-2), (loss2, ref2)

    # 3) f32 inputs on the default fast path (bf16 MXU), auto tile selection.
    loss3 = contrastive_loss_with_temperature(img2, txt2, temperature=0.07)
    loss3 = jax.block_until_ready(loss3)
    ref3 = _reference_loss(img2, txt2, 0.07)
    assert jnp.allclose(loss3, ref3, rtol=2e-2, atol=2e-2), (loss3, ref3)

    # 4) 3x3 grid: exercises the multi-row-tile column-LSE merge, the
    #    "parallel" row axis and the Buffered(3) text stream (nj >= 3).
    B3, D3 = 384, 64
    img3 = jax.random.normal(k5, (B3, D3), dtype=jnp.float32)
    txt3 = jax.random.normal(k6, (B3, D3), dtype=jnp.float32)
    img3 = img3 / jnp.linalg.norm(img3, axis=-1, keepdims=True)
    txt3 = txt3 / jnp.linalg.norm(txt3, axis=-1, keepdims=True)
    loss4 = contrastive_loss_with_temperature(img3, txt3, temperature=0.07,
                                              block_m=128, block_n=128)
    loss4 = jax.block_until_ready(loss4)
    ref4 = _reference_loss(img3, txt3, 0.07)
    assert jnp.allclose(loss4, ref4, rtol=2e-2, atol=2e-2), (loss4, ref4)

    print("KERNEL_OK")
</pallas_src>

<mosaic_0001>
module attributes {stable_mosaic.version = 11 : i64} {
  func.func @_clip_loss_kernel(%arg0: i32, %arg1: i32, %arg2: memref<1x1xf32, #tpu.memory_space<smem>>, %arg3: memref<8x32xf32, #tpu.memory_space<vmem>>, %arg4: memref<8x32xf32, #tpu.memory_space<vmem>>, %arg5: memref<8x32xf32, #tpu.memory_space<vmem>>, %arg6: memref<1x1x8xf32, #tpu.memory_space<vmem>>, %arg7: memref<1x1x1xf32, #tpu.memory_space<vmem>>, %arg8: memref<8x32xf32, #tpu.memory_space<vmem>>, %arg9: memref<8x1xf32, #tpu.memory_space<vmem>>, %arg10: memref<8x1xf32, #tpu.memory_space<vmem>>) attributes {dimension_semantics = [#tpu.dimension_semantics<parallel>, #tpu.dimension_semantics<arbitrary>], iteration_bounds = array<i64: 1, 1>, scalar_prefetch = 0 : i64, scratch_operands = 3 : i64, tpu.core_type = #tpu.core_type<tc>, window_params = [{transform_indices = @transform_0, window_bounds = array<i64: 1, 1>}, {transform_indices = @transform_1, window_bounds = array<i64: 8, 32>}, {transform_indices = @transform_2, window_bounds = array<i64: 8, 32>}, {transform_indices = @transform_3, window_bounds = array<i64: 8, 32>}, {transform_indices = @transform_4, window_bounds = array<i64: 1, 1, 8>}, {transform_indices = @transform_5, window_bounds = array<i64: 1, 1, 1>}]} {
    %c0 = arith.constant 0 : index
    %c0_0 = arith.constant 0 : index
    %0 = memref.load %arg2[%c0, %c0_0] : memref<1x1xf32, #tpu.memory_space<smem>>
    %c0_i32 = arith.constant 0 : i32
    %1 = arith.cmpi eq, %arg1, %c0_i32 : i32
    %2 = arith.extui %1 : i1 to i32
    %c0_i32_1 = arith.constant 0 : i32
    %3 = arith.cmpi ne, %2, %c0_i32_1 : i32
    scf.if %3 {
      %c0_23 = arith.constant 0 : index
      %c0_24 = arith.constant 0 : index
      %37 = vector.load %arg3[%c0_23, %c0_24] : memref<8x32xf32, #tpu.memory_space<vmem>>, vector<8x32xf32>
      %38 = vector.broadcast %0 : f32 to vector<8x32xf32>
      %39 = arith.mulf %37, %38 : vector<8x32xf32>
      %c0_25 = arith.constant 0 : index
      %c0_26 = arith.constant 0 : index
      %40 = vector.load %arg8[%c0_25, %c0_26] : memref<8x32xf32, #tpu.memory_space<vmem>>, vector<8x32xf32>
      tpu.vector_store %arg8[%c0_25, %c0_26], %39 {strides = array<i32>} : memref<8x32xf32, #tpu.memory_space<vmem>>, vector<8x32xf32>,
      %cst_27 = arith.constant 0xFF800000 : f32
      %41 = vector.broadcast %cst_27 : f32 to vector<8x1xf32>
      %c0_28 = arith.constant 0 : index
      %c0_29 = arith.constant 0 : index
      %42 = vector.load %arg9[%c0_28, %c0_29] : memref<8x1xf32, #tpu.memory_space<vmem>>, vector<8x1xf32>
      tpu.vector_store %arg9[%c0_28, %c0_29], %41 {strides = array<i32>} : memref<8x1xf32, #tpu.memory_space<vmem>>, vector<8x1xf32>,
      %cst_30 = arith.constant 0.000000e+00 : f32
      %43 = vector.broadcast %cst_30 : f32 to vector<8x1xf32>
      %c0_31 = arith.constant 0 : index
      %c0_32 = arith.constant 0 : index
      %44 = vector.load %arg10[%c0_31, %c0_32] : memref<8x1xf32, #tpu.memory_space<vmem>>, vector<8x1xf32>
      tpu.vector_store %arg10[%c0_31, %c0_32], %43 {strides = array<i32>} : memref<8x1xf32, #tpu.memory_space<vmem>>, vector<8x1xf32>,
    } else {
    }
    %c0_2 = arith.constant 0 : index
    %c0_3 = arith.constant 0 : index
    %4 = vector.load %arg8[%c0_2, %c0_3] : memref<8x32xf32, #tpu.memory_space<vmem>>, vector<8x32xf32>
    %c0_4 = arith.constant 0 : index
    %c0_5 = arith.constant 0 : index
    %5 = vector.load %arg4[%c0_4, %c0_5] : memref<8x32xf32, #tpu.memory_space<vmem>>, vector<8x32xf32>
    %cst = arith.constant dense<0.000000e+00> : vector<8x8xf32>
    %6 = tpu.matmul %4, %5, %cst {dimension_numbers = #tpu.dot_dimension_numbers<[1], [1], [0], [0], [0, 0, 1, 0], [], []>} : vector<8x32xf32>, vector<8x32xf32>, vector<8x8xf32> -> vector<8x8xf32>
    %c0_6 = arith.constant 0 : index
    %c0_7 = arith.constant 0 : index
    %7 = vector.load %arg9[%c0_6, %c0_7] : memref<8x1xf32, #tpu.memory_space<vmem>>, vector<8x1xf32>
    %cst_8 = arith.constant dense<0xFF800000> : vector<8xf32>
    %8 = vector.multi_reduction <maximumf>, %6, %cst_8 [1] : vector<8x8xf32> to vector<8xf32>
    %9 = vector.shape_cast %8 : vector<8xf32> to vector<8x1xf32>
    %10 = arith.maximumf %7, %9 : vector<8x1xf32>
    %c0_9 = arith.constant 0 : index
    %c0_10 = arith.constant 0 : index
    %11 = vector.load %arg10[%c0_9, %c0_10] : memref<8x1xf32, #tpu.memory_space<vmem>>, vector<8x1xf32>
    %12 = arith.subf %7, %10 : vector<8x1xf32>
    %13 = math.exp %12 : vector<8x1xf32>
    %14 = arith.mulf %11, %13 : vector<8x1xf32>
    %15 = vector.broadcast %10 : vector<8x1xf32> to vector<8x8xf32>
    %16 = arith.subf %6, %15 : vector<8x8xf32>
    %17 = math.exp %16 : vector<8x8xf32>
    %cst_11 = arith.constant dense<0.000000e+00> : vector<8xf32>
    %18 = vector.multi_reduction <add>, %17, %cst_11 [1] : vector<8x8xf32> to vector<8xf32>
    %19 = vector.shape_cast %18 : vector<8xf32> to vector<8x1xf32>
    %20 = arith.addf %14, %19 : vector<8x1xf32>
    %c0_12 = arith.constant 0 : index
    %c0_13 = arith.constant 0 : index
    %21 = vector.load %arg10[%c0_12, %c0_13] : memref<8x1xf32, #tpu.memory_space<vmem>>, vector<8x1xf32>
    tpu.vector_store %arg10[%c0_12, %c0_13], %20 {strides = array<i32>} : memref<8x1xf32, #tpu.memory_space<vmem>>, vector<8x1xf32>,
    %c0_14 = arith.constant 0 : index
    %c0_15 = arith.constant 0 : index
    %22 = vector.load %arg9[%c0_14, %c0_15] : memref<8x1xf32, #tpu.memory_space<vmem>>, vector<8x1xf32>
    tpu.vector_store %arg9[%c0_14, %c0_15], %10 {strides = array<i32>} : memref<8x1xf32, #tpu.memory_space<vmem>>, vector<8x1xf32>,
    %cst_16 = arith.constant dense<0xFF800000> : vector<8xf32>
    %23 = vector.multi_reduction <maximumf>, %6, %cst_16 [0] : vector<8x8xf32> to vector<8xf32>
    %24 = vector.shape_cast %23 : vector<8xf32> to vector<1x8xf32>
    %25 = vector.broadcast %24 : vector<1x8xf32> to vector<8x8xf32>
    %26 = arith.subf %6, %25 : vector<8x8xf32>
    %27 = math.exp %26 : vector<8x8xf32>
    %cst_17 = arith.constant dense<0.000000e+00> : vector<8xf32>
    %28 = vector.multi_reduction <add>, %27, %cst_17 [0] : vector<8x8xf32> to vector<8xf32>
    %29 = vector.shape_cast %28 : vector<8xf32> to vector<1x8xf32>
    %30 = math.log %29 : vector<1x8xf32>
    %31 = arith.addf %24, %30 : vector<1x8xf32>
    %32 = vector.shape_cast %31 : vector<1x8xf32> to vector<1x1x8xf32>
    %c0_18 = arith.constant 0 : index
    %c0_19 = arith.constant 0 : index
    %c0_20 = arith.constant 0 : index
    %33 = vector.load %arg6[%c0_18, %c0_19, %c0_20] : memref<1x1x8xf32, #tpu.memory_space<vmem>>, vector<1x1x8xf32>
    tpu.vector_store %arg6[%c0_18, %c0_19, %c0_20], %32 {strides = array<i32>} : memref<1x1x8xf32, #tpu.memory_space<vmem>>, vector<1x1x8xf32>,
    %c0_i32_21 = arith.constant 0 : i32
    %34 = arith.cmpi eq, %arg1, %c0_i32_21 : i32
    %35 = arith.extui %34 : i1 to i32
    %c0_i32_22 = arith.constant 0 : i32
    %36 = arith.cmpi ne, %35, %c0_i32_22 : i32
    scf.if %36 {
      %c0_23 = arith.constant 0 : index
      %c0_24 = arith.constant 0 : index
      %37 = vector.load %arg3[%c0_23, %c0_24] : memref<8x32xf32, #tpu.memory_space<vmem>>, vector<8x32xf32>
      %c0_25 = arith.constant 0 : index
      %c0_26 = arith.constant 0 : index
      %38 = vector.load %arg5[%c0_25, %c0_26] : memref<8x32xf32, #tpu.memory_space<vmem>>, vector<8x32xf32>
      %39 = arith.mulf %37, %38 : vector<8x32xf32>
      %cst_27 = arith.constant dense<0.000000e+00> : vector<8xf32>
      %40 = vector.multi_reduction <add>, %39, %cst_27 [1] : vector<8x32xf32> to vector<8xf32>
      %41 = vector.shape_cast %40 : vector<8xf32> to vector<8x1xf32>
      %42 = vector.broadcast %0 : f32 to vector<8x1xf32>
      %43 = arith.mulf %41, %42 : vector<8x1xf32>
      %c0_28 = arith.constant 0 : index
      %c0_29 = arith.constant 0 : index
      %44 = vector.load %arg9[%c0_28, %c0_29] : memref<8x1xf32, #tpu.memory_space<vmem>>, vector<8x1xf32>
      %c0_30 = arith.constant 0 : index
      %c0_31 = arith.constant 0 : index
      %45 = vector.load %arg10[%c0_30, %c0_31] : memref<8x1xf32, #tpu.memory_space<vmem>>, vector<8x1xf32>
      %46 = math.log %45 : vector<8x1xf32>
      %47 = arith.addf %44, %46 : vector<8x1xf32>
      %cst_32 = arith.constant 2.000000e+00 : f32
      %48 = vector.broadcast %cst_32 : f32 to vector<8x1xf32>
      %49 = arith.mulf %48, %43 : vector<8x1xf32>
      %50 = arith.subf %47, %49 : vector<8x1xf32>
      %51 = vector.shape_cast %50 : vector<8x1xf32> to vector<1x8x1xf32>
      %cst_33 = arith.constant dense<0.000000e+00> : vector<1xf32>
      %52 = vector.multi_reduction <add>, %51, %cst_33 [1, 2] : vector<1x8x1xf32> to vector<1xf32>
      %53 = vector.shape_cast %52 : vector<1xf32> to vector<1x1x1xf32>
      %54 = vector.extract %53[0, 0, 0] : f32 from vector<1x1x1xf32>
      %55 = vector.broadcast %54 : f32 to vector<1x1x1xf32>
      %c0_34 = arith.constant 0 : index
      %c0_35 = arith.constant 0 : index
      %c0_36 = arith.constant 0 : index
      %56 = vector.load %arg7[%c0_34, %c0_35, %c0_36] : memref<1x1x1xf32, #tpu.memory_space<vmem>>, vector<1x1x1xf32>
      tpu.vector_store %arg7[%c0_34, %c0_35, %c0_36], %55 {strides = array<i32>} : memref<1x1x1xf32, #tpu.memory_space<vmem>>, vector<1x1x1xf32>,
    } else {
    }
    return
  }
  func.func @transform_0(%arg0: i32, %arg1: i32) -> (i32, i32) {
    %c0_i32 = arith.constant 0 : i32
    %c0_i32_0 = arith.constant 0 : i32
    %c0_i32_1 = arith.constant 0 : i32
    return %c0_i32, %c0_i32_0 : i32, i32
  }
  func.func @transform_1(%arg0: i32, %arg1: i32) -> (i32, i32) {
    %c0_i32 = arith.constant 0 : i32
    %c0_i32_0 = arith.constant 0 : i32
    return %arg0, %c0_i32 : i32, i32
  }
  func.func @transform_2(%arg0: i32, %arg1: i32) -> (i32, i32) {
    %c0_i32 = arith.constant 0 : i32
    %c0_i32_0 = arith.constant 0 : i32
    return %arg1, %c0_i32 : i32, i32
  }
  func.func @transform_3(%arg0: i32, %arg1: i32) -> (i32, i32) {
    %c0_i32 = arith.constant 0 : i32
    %c0_i32_0 = arith.constant 0 : i32
    return %arg0, %c0_i32 : i32, i32
  }
  func.func @transform_4(%arg0: i32, %arg1: i32) -> (i32, i32, i32) {
    %c0_i32 = arith.constant 0 : i32
    %c0_i32_0 = arith.constant 0 : i32
    return %arg0, %c0_i32, %arg1 : i32, i32, i32
  }
  func.func @transform_5(%arg0: i32, %arg1: i32) -> (i32, i32, i32) {
    %c0_i32 = arith.constant 0 : i32
    %c0_i32_0 = arith.constant 0 : i32
    %c0_i32_1 = arith.constant 0 : i32
    return %arg0, %c0_i32, %c0_i32_0 : i32, i32, i32
  }
}

</mosaic_0001>

<llo_original>
// kernel: tpu_custom_call.1
$region0: #{tpu_custom_call.1}
  #allocation0 [shape = 'u32[]', space=smem, size = 0x4, offset = 0x4, fixed_abs, tag = 'smem constant byte address 0x4 - core index']
  #allocation1 [shape = 'u32[72,128]{1,0:T(1,128)}', space=vmem, size = 0x9000, scoped, tag = 'internal scratch']
  #allocation2 [shape = 'f32[8,32]{1,0:T(8,128)}', space=vmem, size = 0x1000, scoped, tag = 'scratch operand']
  #allocation3 [shape = 'f32[8,1]{1,0:T(8,128)}', space=vmem, size = 0x1000, scoped, tag = 'scratch operand']
  #allocation4 [shape = 'f32[8,1]{1,0:T(8,128)}', space=vmem, size = 0x1000, scoped, tag = 'scratch operand']
  #allocation5 [shape = 'f32[1,1]{1,0:T(1,128)S(6)}', space=smem, size = 0x200, scoped, tag = 'scoped memory for tpu_custom_call.1']
  %s0 = inlined_call_operand.<no memory space> [shape: f32[1,1], index: 0, kind: input, shape index: {}]
  %s1 = inlined_call_operand.hbm [shape: f32[8,32], index: 1, kind: input, shape index: {}]
  %s2 = inlined_call_operand.hbm [shape: f32[8,32], index: 2, kind: input, shape index: {}]
  %s3 = inlined_call_operand.hbm [shape: f32[8,32], index: 3, kind: input, shape index: {}]
  %s4 = inlined_call_operand.hbm [shape: f32[1,1,8], index: 4, kind: output, shape index: {0}]
  %s5 = inlined_call_operand.hbm [shape: f32[1,1,1], index: 5, kind: output, shape index: {1}]
  %6 = xla_tuple %s4, %s5
  %s7 = sld [smem:[#allocation0]]
  $region54: #{tpu_custom_call.1} parent=0
    _
  %s9 = ssub.s32 1, %s7
  %s10 = scalar_select 0, %s9, %s7
  %11 = sst [smem:[#allocation5]] %s0
  $region1: #{tpu_custom_call.1} parent=0
    #allocation6 [shape = 'u8[4096]{0}', space=vmem, size = 0x1000, scoped, tag = 'input window, operand 1, single buffered']
    #allocation7 [shape = 's32[1]{0}', space=sflag, size = 0x4, scoped, tag = 'scoped memory for tpu_custom_call.1']
    #allocation8 [shape = 's32[1]{0}', space=sflag, size = 0x4, scoped, tag = 'scoped memory for tpu_custom_call.1']
    #allocation9 [shape = 'u8[4096]{0}', space=vmem, size = 0x1000, scoped, tag = 'input window, operand 2, single buffered']
    #allocation10 [shape = 's32[1]{0}', space=sflag, size = 0x4, scoped, tag = 'scoped memory for tpu_custom_call.1']
    #allocation11 [shape = 'u8[4096]{0}', space=vmem, size = 0x1000, scoped, tag = 'input window, operand 3, single buffered']
    #allocation12 [shape = 'u8[512]{0}', space=vmem, size = 0x400, scoped, tag = 'output window, operand 0, single buffered']
    #allocation13 [shape = 'u8[512]{0}', space=vmem, size = 0x400, scoped, tag = 'output window, operand 1, single buffered']
    #allocation14 [shape = 's32[1]{0}', space=sflag, size = 0x4, scoped, tag = 'scoped memory for tpu_custom_call.1']
    %12 = vsyncpa [#allocation7], 0
    %13 = vsyncpa [#allocation10], 0
    %14 = vsyncpa [#allocation8], 0
    %15 = vsyncpa [#allocation14], 0
    // Predicated region
    $region2: #{tpu_custom_call.1} parent=1 // pred_check
      _
    $region3: #{tpu_custom_call.1} parent=1 // pred_check_branch
      %17 = sbr.rel (0) target = $region5
    $region4: #{tpu_custom_call.1} parent=1 // pred_region
      _
    $region5: #{tpu_custom_call.1} parent=1 // pred_fallthru
      _
    // Predicated region
    $region6: #{tpu_custom_call.1} parent=1 // pred_check
      _
    $region7: #{tpu_custom_call.1} parent=1 // pred_check_branch
      %19 = sbr.rel (0) target = $region9
    $region8: #{tpu_custom_call.1} parent=1 // pred_region
      %21 = vsyncadd [#allocation7], 0
      %s23 = sshll.u32 %s1, 4
      %s24 = int_to_ptr.hbm [resolvable:$true] %s23
      %s25 = sshll.u32 [#allocation6], 4
      %s26 = int_to_ptr.vmem [resolvable:$true] %s25
      %28 = dma.hbm_to_vmem [thread:$0]  %s24, 128, %s26, [#allocation7]
    $region9: #{tpu_custom_call.1} parent=1 // pred_fallthru
      _
    // Predicated region
    $region10: #{tpu_custom_call.1} parent=1 // pred_check
      _
    $region11: #{tpu_custom_call.1} parent=1 // pred_check_branch
      %30 = sbr.rel (0) target = $region13
    $region12: #{tpu_custom_call.1} parent=1 // pred_region
      %32 = vsyncadd [#allocation10], 0
      %s34 = sshll.u32 %s2, 4
      %s35 = int_to_ptr.hbm [resolvable:$true] %s34
      %s36 = sshll.u32 [#allocation9], 4
      %s37 = int_to_ptr.vmem [resolvable:$true] %s36
      %39 = dma.hbm_to_vmem [thread:$0]  %s35, 128, %s37, [#allocation10]
    $region13: #{tpu_custom_call.1} parent=1 // pred_fallthru
      _
    // Predicated region
    $region14: #{tpu_custom_call.1} parent=1 // pred_check
      _
    $region15: #{tpu_custom_call.1} parent=1 // pred_check_branch
      %41 = sbr.rel (0) target = $region17
    $region16: #{tpu_custom_call.1} parent=1 // pred_region
      %43 = vsyncadd [#allocation10], 0
      %s45 = sshll.u32 %s3, 4
      %s46 = int_to_ptr.hbm [resolvable:$true] %s45
      %s47 = sshll.u32 [#allocation11], 4
      %s48 = int_to_ptr.vmem [resolvable:$true] %s47
      %50 = dma.hbm_to_vmem [thread:$0]  %s46, 128, %s48, [#allocation10]
    $region17: #{tpu_custom_call.1} parent=1 // pred_fallthru
      _
    // Predicated region
    $region18: #{tpu_custom_call.1} parent=1 // pred_check
      _
    $region19: #{tpu_custom_call.1} parent=1 // pred_check_branch
      %52 = sbr.rel (0) target = $region21
    $region20: #{tpu_custom_call.1} parent=1 // pred_region
      %54 = dma.done [#allocation7], 128
    $region21: #{tpu_custom_call.1} parent=1 // pred_fallthru
      _
    // Predicated region
    $region22: #{tpu_custom_call.1} parent=1 // pred_check
      _
    $region23: #{tpu_custom_call.1} parent=1 // pred_check_branch
      %56 = sbr.rel (0) target = $region25
    $region24: #{tpu_custom_call.1} parent=1 // pred_region
      %58 = dma.done [#allocation10], 128
    $region25: #{tpu_custom_call.1} parent=1 // pred_fallthru
      _
    // Predicated region
    $region26: #{tpu_custom_call.1} parent=1 // pred_check
      _
    $region27: #{tpu_custom_call.1} parent=1 // pred_check_branch
      %60 = sbr.rel (0) target = $region29
    $region28: #{tpu_custom_call.1} parent=1 // pred_region
      %62 = dma.done [#allocation10], 128
    $region29: #{tpu_custom_call.1} parent=1 // pred_fallthru
      _
    %s63 = sld [smem:[#allocation5]]
    %p64 = scmp.eq.s32.totalorder 0, 0
    // Predicated region
    $region30: #{tpu_custom_call.1} parent=1 // pred_check
      %p65 = pneg %p64
    $region31: #{tpu_custom_call.1} parent=1 // pred_check_branch
      %67 = sbr.rel (%p65) target = $region33
    $region32: #{tpu_custom_call.1} parent=1 // pred_region
      %v68 = vld [vmem:[#allocation6] sm:$0xff]
      %v69 = vstv %s63
      %v70 = vmul.f32 %v68, %v69
      %vm71 = vcmask 261120
      %72 = vst.msk [vmem:[#allocation2] sm:$0xff] %vm71, %v70
      %vm73 = vcmask 7168
      %74 = vst.msk [vmem:[#allocation3] sm:$0xff] %vm73, -inf
      %75 = vst.msk [vmem:[#allocation4] sm:$0xff] %vm73, 0.0
    $region33: #{tpu_custom_call.1} parent=1 // pred_fallthru
      _
    %v76 = vld [vmem:[#allocation2] sm:$0xff]
    %v77 = vld [vmem:[#allocation9] sm:$0xff]
    %vm78 = vcmask 261120
    %v80 = vsel %vm78, %v76, 0
    %v83 = vsel %vm78, %v77, 0
    %85 = vmatpush.xpose.msra.mxu0 0.0
    %86 = vmatpush.xpose.msra.mxu0 0.0
    %87 = vmatpush.xpose.msra.mxu0 0.0
    %88 = vmatpush.xpose.msra.mxu0 0.0
    %89 = vmatpush.xpose.msra.mxu0 0.0
    %90 = vmatpush.xpose.msra.mxu0 0.0
    %91 = vmatpush.xpose.msra.mxu0 0.0
    %92 = vmatpush.xpose.msra.mxu0 0.0
    %93 = vmatpush.xpose.msra.mxu0 0.0
    %94 = vmatpush.xpose.msra.mxu0 0.0
    %95 = vmatpush.xpose.msra.mxu0 0.0
    %96 = vmatpush.xpose.msra.mxu0 0.0
    %97 = vmatpush.xpose.msra.mxu0 0.0
    %98 = vmatpush.xpose.msra.mxu0 0.0
    %99 = vmatpush.xpose.msra.mxu0 0.0
    %100 = vmatpush.xpose.msra.mxu0 %v83
    %101 = vmatmul.f32.gmra.mxu0 %v80
    %v102 = vpop.f32.mrf.mxu0
    %v103 = vadd.f32 0.0, %v102
    %104 = vdwg.mxu0
    %v105 = vld [vmem:[#allocation3] sm:$0xff]
    %vm106 = vcmask 64512
    %v107 = vsel %vm106, %v103, -inf
    %108 = vmax.xlane.f32.xlu0 %v107
    %v109 = vpop.xlane.xlu0 %108
    %v110 = vmax.f32 %v105, %v109
    %v111 = vld [vmem:[#allocation4] sm:$0xff]
    %v112 = vsub.f32 %v105, %v110
    %v113 = vmul.f32 %v112, 1.442695
    %v114 = vpow.pop %v113
    %v115 = vmul.f32 %v111, %v114
    %117 = vset.pattern.permute.xlu0 0
    %118 = vperm.xlu0 %117, %v110
    %v119 = vpop.permute.xlu0 %118
    %v121 = vsub.f32 %v103, %v119
    %v122 = vmul.f32 %v121, 1.442695
    %v123 = vpow.pop %v122
    %v124 = vsel %vm106, %v123, 0.0
    %125 = vadd.xlane.f32.xlu0 %v124
    %v126 = vpop.xlane.xlu0 %125
    %v127 = vadd.f32 %v115, %v126
    %vm128 = vcmask 7168
    %129 = vst.msk [vmem:[#allocation4] sm:$0xff] %vm128, %v127
    %130 = vst.msk [vmem:[#allocation3] sm:$0xff] %vm128, %v110
    %v131 = vrot.slane %v107, 4
    %v132 = vmax.f32 %v107, %v131
    %v133 = vrot.slane %v132, 2
    %v134 = vmax.f32 %v132, %v133
    %v135 = vrot.slane %v134, 1
    %v136 = vmax.f32 %v134, %v135
    %v137 = vsub.f32 %v103, %v136
    %v138 = vmul.f32 %v137, 1.442695
    %v139 = vpow.pop %v138
    %v140 = vsel %vm106, %v139, 0.0
    %v141 = vrot.slane %v140, 4
    %v142 = vadd.f32 %v140, %v141
    %v143 = vrot.slane %v142, 2
    %v144 = vadd.f32 %v142, %v143
    %v145 = vrot.slane %v144, 1
    %v146 = vadd.f32 %v144, %v145
    %v147 = vlog2.pop %v146
    %v148 = vmul.f32 %v147, 0.6931472
    %v149 = vadd.f32 %v136, %v148
    %vm150 = vcmask 57344
    %151 = vst.msk [vmem:[#allocation12] sm:$0x1] %vm150, %v149
    // Predicated region
    $region34: #{tpu_custom_call.1} parent=1 // pred_check
      %p152 = pneg %p64
    $region35: #{tpu_custom_call.1} parent=1 // pred_check_branch
      %154 = sbr.rel (%p152) target = $region37
    $region36: #{tpu_custom_call.1} parent=1 // pred_region
      %v155 = vld [vmem:[#allocation6] sm:$0xff]
      %v156 = vld [vmem:[#allocation11] sm:$0xff]
      %v157 = vmul.f32 %v155, %v156
      %v158 = vsel %vm78, %v157, 0.0
      %159 = vadd.xlane.f32.xlu0 %v158
      %v160 = vpop.xlane.xlu0 %159
      %v161 = vstv %s63
      %v162 = vmul.f32 %v160, %v161
      %v163 = vld [vmem:[#allocation3] sm:$0xff]
      %v164 = vld [vmem:[#allocation4] sm:$0xff]
      %v165 = vlog2.pop %v164
      %v166 = vmul.f32 %v165, 0.6931472
      %v167 = vadd.f32 %v163, %v166
      %v168 = vmul.f32 %v162, 2.0
      %v169 = vsub.f32 %v167, %v168
      %v170 = vsel %vm128, %v169, 0.0
      %171 = vadd.xlane.f32.xlu0 %v170
      %v172 = vpop.xlane.xlu0 %171
      %v173 = vrot.slane %v172, 4
      %v174 = vadd.f32 %v172, %v173
      %v175 = vrot.slane %v174, 2
      %v176 = vadd.f32 %v174, %v175
      %v177 = vrot.slane %v176, 1
      %v178 = vadd.f32 %v176, %v177
      %s179 = vtos %v178
      %v180 = vstv %s179
      %vm181 = vcmask 0
      %182 = vst.msk [vmem:[#allocation13] sm:$0x1] %vm181, %v180
    $region37: #{tpu_custom_call.1} parent=1 // pred_fallthru
      _
    // Predicated region
    $region38: #{tpu_custom_call.1} parent=1 // pred_check
      _
    $region39: #{tpu_custom_call.1} parent=1 // pred_check_branch
      %184 = sbr.rel (0) target = $region41
    $region40: #{tpu_custom_call.1} parent=1 // pred_region
      %186 = vsyncadd [#allocation8], 0
      %s188 = sshll.u32 [#allocation12], 4
      %s189 = int_to_ptr.vmem [resolvable:$true] %s188
      %s190 = sshll.u32 %s4, 4
      %s191 = int_to_ptr.hbm [resolvable:$true] %s190
      %193 = dma.vmem_to_hbm [thread:$0]  %s189, 16, %s191, [#allocation8]
    $region41: #{tpu_custom_call.1} parent=1 // pred_fallthru
      _
    // Predicated region
    $region42: #{tpu_custom_call.1} parent=1 // pred_check
      _
    $region43: #{tpu_custom_call.1} parent=1 // pred_check_branch
      %195 = sbr.rel (0) target = $region45
    $region44: #{tpu_custom_call.1} parent=1 // pred_region
      %197 = vsyncadd [#allocation14], 0
      %s199 = sshll.u32 [#allocation13], 4
      %s200 = int_to_ptr.vmem [resolvable:$true] %s199
      %s201 = sshll.u32 %s5, 4
      %s202 = int_to_ptr.hbm [resolvable:$true] %s201
      %204 = dma.vmem_to_hbm [thread:$0]  %s200, 16, %s202, [#allocation14]
    $region45: #{tpu_custom_call.1} parent=1 // pred_fallthru
      _
    // Predicated region
    $region46: #{tpu_custom_call.1} parent=1 // pred_check
      _
    $region47: #{tpu_custom_call.1} parent=1 // pred_check_branch
      %206 = sbr.rel (0) target = $region49
    $region48: #{tpu_custom_call.1} parent=1 // pred_region
      %208 = dma.done [#allocation8], 16
    $region49: #{tpu_custom_call.1} parent=1 // pred_fallthru
      _
    // Predicated region
    $region50: #{tpu_custom_call.1} parent=1 // pred_check
      _
    $region51: #{tpu_custom_call.1} parent=1 // pred_check_branch
      %210 = sbr.rel (0) target = $region53
    $region52: #{tpu_custom_call.1} parent=1 // pred_region
      %212 = dma.done [#allocation14], 16
    $region53: #{tpu_custom_call.1} parent=1 // pred_fallthru
      _
    %213 = vsyncpa [#allocation7], 1
    %214 = vsyncpa [#allocation10], 1
    %215 = vsyncpa [#allocation8], 1
    %216 = vsyncpa [#allocation14], 1

</llo_original>
